<compile_context>
chip_gen: v6e
topology: v6e:2x2x1
jax: 0.10.0
libtpu: 0.0.40
codegen_flags: <defaults>
</compile_context>

<pallas_src>
import functools

import numpy as np
import jax
import jax.numpy as jnp
from jax.experimental import pallas as pl
from jax.experimental.pallas import tpu as pltpu

MAX_LENGTH = 77           # BERTTokenizer(max_length=77)
LANE = 128                # max raw-token lanes the kernel ever reads per row
MAX_TB = 8192             # batch-tile cap (multiple of 8)
SPLIT_B = 512             # above this, force >= 2 grid steps (v7x megacore)
VMEM_LIMIT = 32 << 20     # explicit scoped-VMEM limit (v5e default is 16 MiB)
CLS_ID = 101
SEP_ID = 102
PAD_ID = 0


def _round_up(x, m):
    return ((x + m - 1) // m) * m


def _tokenize_kernel(n_raw, len_ref, raw_ref, out_ref):
    """[CLS] + truncated body + [SEP] + PAD for one batch tile.

    n_raw:   static int — number of real raw tokens supplied per row.
    len_ref: [TB, 1] int32 — valid raw-token count per row.
    raw_ref: [TB, W] int32 — raw token ids, W = min(raw width, 128) >= L-1.
    out_ref: [TB, L] int32 — tokenized output, L = max_length.
    """
    TB, L = out_ref.shape

    # Effective body length: truncate to max_length-2 and clamp to the number
    # of raw tokens actually supplied (defensive, matches HF truncation).
    eff = jnp.minimum(len_ref[...], jnp.int32(min(L - 2, n_raw)))      # [TB,1]

    # Output lane 0 is always [CLS].
    out_ref[:, :1] = jnp.full((TB, 1), CLS_ID, jnp.int32)

    # Output lane j (j >= 1) holds raw token j-1.  Express the shift as
    # "pos-1 logic" + a lane-offset store instead of building a pre-shifted
    # slab in the wrapper: no extra HBM pass, and the lane shift rides the
    # otherwise-idle store/XLU path.
    pos = jax.lax.broadcasted_iota(jnp.int32, (TB, L - 1), 1)   # raw index j-1
    body = raw_ref[:, :L - 1]                                   # [TB, L-1]
    out_ref[:, 1:] = jnp.where(pos == eff, jnp.int32(SEP_ID),
                     jnp.where(pos < eff, body, jnp.int32(PAD_ID)))


def bert_tokenize(raw_token_ids, lengths, max_length=MAX_LENGTH):
    """JAX wrapper mimicking BERTTokenizer.forward.

    raw_token_ids: [B, R] int32 synthetic (pre-WordPiece'd) token ids
    lengths:       [B]    int32 valid raw-token count per example
    returns:       [B, max_length] int32 (PyTorch returns int64; values match)
    """
    assert 2 < max_length <= LANE
    raw = raw_token_ids.astype(jnp.int32)
    B, R = raw.shape
    n_raw = R
    lens = lengths.astype(jnp.int32).reshape(B, 1)

    # Edge case only: if fewer raw columns than the kernel's body window were
    # supplied, pad once.  No-op (zero extra HBM traffic) for typical inputs.
    if R < max_length - 1:
        raw = jnp.pad(raw, ((0, 0), (0, max_length - 1 - R)))
        R = max_length - 1

    # Only the first max_length-1 raw tokens can appear in the output, so the
    # kernel reads at most the first 128 (lane-aligned) columns of `raw`.
    W = R if R <= LANE else LANE

    # ---- batch tiling ------------------------------------------------------
    if B <= SPLIT_B:
        # Small-batch regime (the real Stable-Diffusion text-encoder case):
        # single grid step; wall time is launch-overhead dominated here.
        tb, b_pad = B, B
    else:
        # >= 2 grid steps so v7x shards the "parallel" batch axis across both
        # TensorCores; tiles up to MAX_TB rows amortize ~0.35 us/step overhead
        # and keep the double-buffered working set ~24 MiB (< VMEM_LIMIT).
        n_steps = max(2, pl.cdiv(B, MAX_TB))
        tb = min(_round_up(pl.cdiv(B, n_steps), 8), MAX_TB)
        n_steps = pl.cdiv(B, tb)
        b_pad = n_steps * tb
        if b_pad != B:
            raw = jnp.pad(raw, ((0, b_pad - B), (0, 0)))
            lens = jnp.pad(lens, ((0, b_pad - B), (0, 0)))

    grid = (b_pad // tb,)
    kernel = functools.partial(_tokenize_kernel, n_raw)

    out = pl.pallas_call(
        kernel,
        grid=grid,
        in_specs=[pl.BlockSpec((tb, 1), lambda i: (i, 0)),    # lengths
                  pl.BlockSpec((tb, W), lambda i: (i, 0))],   # raw tokens
        out_specs=pl.BlockSpec((tb, max_length), lambda i: (i, 0)),
        out_shape=jax.ShapeDtypeStruct((b_pad, max_length), jnp.int32),
        compiler_params=pltpu.CompilerParams(
            dimension_semantics=("parallel",),
            vmem_limit_bytes=VMEM_LIMIT),
    )(lens, raw)

    if b_pad != B:
        out = out[:B]
    return out


def _reference(raw_token_ids, lengths, max_length=MAX_LENGTH):
    raw = np.asarray(raw_token_ids)
    lens = np.asarray(lengths)
    B, R = raw.shape
    out = np.full((B, max_length), PAD_ID, np.int32)
    for b in range(B):
        n = min(int(lens[b]), max_length - 2, R)
        out[b, 0] = CLS_ID
        out[b, 1:1 + n] = raw[b, :n]
        out[b, 1 + n] = SEP_ID
    return out


if __name__ == "__main__":
    key = jax.random.PRNGKey(0)
    k_tok, k_tok2, k_len2 = jax.random.split(key, 3)

    # --- small-batch test (the real SD use case): one short prompt, one that
    # --- gets truncated.  Single grid step.
    batch, raw_len = 2, 96
    raw_token_ids = jax.random.randint(
        k_tok, (batch, raw_len), minval=1000, maxval=30000, dtype=jnp.int32)
    lengths = jnp.array([5, 90], dtype=jnp.int32)

    tokens = jax.block_until_ready(bert_tokenize(raw_token_ids, lengths))
    assert tokens.shape == (batch, MAX_LENGTH), tokens.shape
    np.testing.assert_array_equal(np.asarray(tokens),
                                  _reference(raw_token_ids, lengths))

    # --- mid-size batch test: exercises the >=2-step grid split (v7x path),
    # --- batch padding, and the length clamp (some lengths exceed raw_len).
    batch2 = 520
    raw2 = jax.random.randint(
        k_tok2, (batch2, raw_len), minval=1000, maxval=30000, dtype=jnp.int32)
    lens2 = jax.random.randint(
        k_len2, (batch2,), minval=0, maxval=120, dtype=jnp.int32)

    tokens2 = jax.block_until_ready(bert_tokenize(raw2, lens2))
    assert tokens2.shape == (batch2, MAX_LENGTH), tokens2.shape
    np.testing.assert_array_equal(np.asarray(tokens2), _reference(raw2, lens2))

    print("KERNEL_OK")
</pallas_src>

<mosaic_0001>
module attributes {stable_mosaic.version = 11 : i64} {
  func.func @_tokenize_kernel(%arg0: i32, %arg1: memref<2x1xi32, #tpu.memory_space<vmem>>, %arg2: memref<2x96xi32, #tpu.memory_space<vmem>>, %arg3: memref<2x77xi32, #tpu.memory_space<vmem>>) attributes {dimension_semantics = [#tpu.dimension_semantics<parallel>], iteration_bounds = array<i64: 1>, scalar_prefetch = 0 : i64, scratch_operands = 0 : i64, tpu.core_type = #tpu.core_type<tc>, window_params = [{transform_indices = @transform_0, window_bounds = array<i64: 2, 1>}, {transform_indices = @transform_1, window_bounds = array<i64: 2, 96>}, {transform_indices = @transform_2, window_bounds = array<i64: 2, 77>}]} {
    %c0 = arith.constant 0 : index
    %c0_0 = arith.constant 0 : index
    %0 = vector.load %arg1[%c0, %c0_0] : memref<2x1xi32, #tpu.memory_space<vmem>>, vector<2x1xi32>
    %c75_i32 = arith.constant 75 : i32
    %1 = vector.broadcast %c75_i32 : i32 to vector<2x1xi32>
    %2 = arith.minsi %0, %1 : vector<2x1xi32>
    %c101_i32 = arith.constant 101 : i32
    %3 = vector.broadcast %c101_i32 : i32 to vector<2x1xi32>
    %c0_1 = arith.constant 0 : index
    %c0_2 = arith.constant 0 : index
    %4 = vector.load %arg3[%c0_1, %c0_2] : memref<2x77xi32, #tpu.memory_space<vmem>>, vector<2x1xi32>
    tpu.vector_store %arg3[%c0_1, %c0_2], %3 {strides = array<i32>} : memref<2x77xi32, #tpu.memory_space<vmem>>, vector<2x1xi32>,
    %5 = tpu.iota {dimensions = array<i32: 1>} : vector<2x76xi32>
    %c0_3 = arith.constant 0 : index
    %c0_4 = arith.constant 0 : index
    %6 = vector.load %arg2[%c0_3, %c0_4] : memref<2x96xi32, #tpu.memory_space<vmem>>, vector<2x76xi32>
    %7 = vector.broadcast %2 : vector<2x1xi32> to vector<2x76xi32>
    %8 = arith.cmpi eq, %5, %7 : vector<2x76xi32>
    %9 = vector.broadcast %2 : vector<2x1xi32> to vector<2x76xi32>
    %10 = arith.cmpi slt, %5, %9 : vector<2x76xi32>
    %c0_i32 = arith.constant 0 : i32
    %11 = vector.broadcast %c0_i32 : i32 to vector<2x76xi32>
    %12 = arith.select %10, %6, %11 : vector<2x76xi1>, vector<2x76xi32>
    %c102_i32 = arith.constant 102 : i32
    %13 = vector.broadcast %c102_i32 : i32 to vector<2x76xi32>
    %14 = arith.select %8, %13, %12 : vector<2x76xi1>, vector<2x76xi32>
    %c0_5 = arith.constant 0 : index
    %c1 = arith.constant 1 : index
    %15 = vector.load %arg3[%c0_5, %c1] : memref<2x77xi32, #tpu.memory_space<vmem>>, vector<2x76xi32>
    tpu.vector_store %arg3[%c0_5, %c1], %14 {strides = array<i32>} : memref<2x77xi32, #tpu.memory_space<vmem>>, vector<2x76xi32>,
    return
  }
  func.func @transform_0(%arg0: i32) -> (i32, i32) {
    %c0_i32 = arith.constant 0 : i32
    %c0_i32_0 = arith.constant 0 : i32
    return %arg0, %c0_i32 : i32, i32
  }
  func.func @transform_1(%arg0: i32) -> (i32, i32) {
    %c0_i32 = arith.constant 0 : i32
    %c0_i32_0 = arith.constant 0 : i32
    return %arg0, %c0_i32 : i32, i32
  }
  func.func @transform_2(%arg0: i32) -> (i32, i32) {
    %c0_i32 = arith.constant 0 : i32
    %c0_i32_0 = arith.constant 0 : i32
    return %arg0, %c0_i32 : i32, i32
  }
}

</mosaic_0001>

<llo_original>
// kernel: tpu_custom_call.1
$region0: #{tpu_custom_call.1}
  #allocation0 [shape = 'u32[]', space=smem, size = 0x4, offset = 0x4, fixed_abs, tag = 'smem constant byte address 0x4 - core index']
  #allocation1 [shape = 'u32[144,128]{1,0:T(1,128)}', space=vmem, size = 0x12000, scoped, tag = 'internal scratch']
  %s0 = inlined_call_operand.vmem [shape: s32[2,1], index: 0, kind: input, shape index: {}]
  %s1 = inlined_call_operand.vmem [shape: s32[2,96], index: 1, kind: input, shape index: {}]
  %s2 = inlined_call_operand.hbm [shape: s32[2,77], index: 2, kind: output, shape index: {}]
  %s3 = sld [smem:[#allocation0]]
  $region18: #{tpu_custom_call.1} parent=0
    _
  %s5 = ssub.s32 1, %s3
  %s6 = scalar_select 0, %s5, %s3
  $region1: #{tpu_custom_call.1} parent=0
    #allocation2 [shape = 'u8[1024]{0}', space=vmem, size = 0x400, scoped, tag = 'output window, operand 0, single buffered']
    #allocation3 [shape = 's32[1]{0}', space=sflag, size = 0x4, scoped, tag = 'scoped memory for tpu_custom_call.1']
    %7 = vsyncpa [#allocation3], 0
    // Predicated region
    $region2: #{tpu_custom_call.1} parent=1 // pred_check
      _
    $region3: #{tpu_custom_call.1} parent=1 // pred_check_branch
      %9 = sbr.rel (0) target = $region5
    $region4: #{tpu_custom_call.1} parent=1 // pred_region
      _
    $region5: #{tpu_custom_call.1} parent=1 // pred_fallthru
      _
    // Predicated region
    $region6: #{tpu_custom_call.1} parent=1 // pred_check
      _
    $region7: #{tpu_custom_call.1} parent=1 // pred_check_branch
      %11 = sbr.rel (0) target = $region9
    $region8: #{tpu_custom_call.1} parent=1 // pred_region
      _
    $region9: #{tpu_custom_call.1} parent=1 // pred_fallthru
      _
    %v12 = vld [vmem:[%s0] sm:$0x3]
    %vm13 = vcmp.lt.s32.totalorder %v12, 75
    %v14 = vsel %vm13, %v12, 75
    %vm15 = vcmask 1024
    %16 = vst.msk [vmem:[#allocation2] sm:$0x3] %vm15, 101
    %v17 = vlaneseq
    %v18 = vand.u32 %v17, 127
    %v19 = vld [vmem:[%s1] sm:$0x3]
    %20 = vset.pattern.permute.xlu0 0
    %21 = vperm.xlu0 %20, %v14
    %v22 = vpop.permute.xlu0 %21
    %vm23 = vcmp.eq.s32.totalorder %v18, %v22
    %vm24 = vcmp.lt.s32.totalorder %v18, %v22
    %v25 = vsel %vm24, %v19, 0
    %v26 = vsel %vm23, 102, %v25
    %27 = vrot.lane.b32.xlu0 %v26, 1
    %v28 = vpop.permute.xlu0 %27
    %vm29 = vcmask 623624
    %30 = vst.msk [vmem:[#allocation2] sm:$0x3] %vm29, %v28
    // Predicated region
    $region10: #{tpu_custom_call.1} parent=1 // pred_check
      _
    $region11: #{tpu_custom_call.1} parent=1 // pred_check_branch
      %32 = sbr.rel (0) target = $region13
    $region12: #{tpu_custom_call.1} parent=1 // pred_region
      %s34 = ssub.s32 32, 32
      %35 = vsyncadd [#allocation3], %s34
      %s37 = sshll.u32 [#allocation2], 4
      %s38 = int_to_ptr.vmem [resolvable:$true] %s37
      %40 = dma.vmem_to_hbm [thread:$0]  %s38, 32, %s2, [#allocation3]
    $region13: #{tpu_custom_call.1} parent=1 // pred_fallthru
      _
    // Predicated region
    $region14: #{tpu_custom_call.1} parent=1 // pred_check
      _
    $region15: #{tpu_custom_call.1} parent=1 // pred_check_branch
      %42 = sbr.rel (0) target = $region17
    $region16: #{tpu_custom_call.1} parent=1 // pred_region
      %43 = dma.done [#allocation3], 32
    $region17: #{tpu_custom_call.1} parent=1 // pred_fallthru
      _
    %44 = vsyncpa [#allocation3], 1

</llo_original>
